<compile_context>
chip_gen: v7x
topology: tpu7x:2x2x1
jax: 0.10.0
libtpu: 0.0.40
codegen_flags: <defaults>
</compile_context>

<pallas_src>
import jax
import jax.numpy as jnp
from jax import lax
from jax.experimental import pallas as pl
from jax.experimental.pallas import tpu as pltpu

DROPOUT_P = 0.5          # ClassifFineTuneConf.dropout default
LANE = 128               # TPU lane width; classifier head padded to a multiple of this


def _fmix32(h):
    """murmur3 32-bit finalizer on int32 (bit-identical to the uint32 version)."""
    def srl(x, n):
        return lax.shift_right_logical(x, jnp.full(x.shape, n, jnp.int32))
    h = h ^ srl(h, 16)
    h = h * jnp.int32(-2048144789)    # 0x85EBCA6B
    h = h ^ srl(h, 13)
    h = h * jnp.int32(-1028477387)    # 0xC2B2AE35
    h = h ^ srl(h, 16)
    return h


def doc_classifier_kernel(seed_ref, docs_ref, nfrags_ref, w_ref, b_ref, out_ref):
    TB, T, D = docs_ref.shape

    # ---- encoder stand-in: fragment-count-masked mean pooling -----------------
    tok_ids = lax.broadcasted_iota(jnp.int32, (TB, T), 1)             # (TB, T)
    mask = (tok_ids < nfrags_ref[...]).astype(jnp.float32)            # (TB, T)
    docs = docs_ref[...].astype(jnp.float32)                          # (TB, T, D) f32
    summed = jnp.sum(docs * mask[:, :, None], axis=1)                 # (TB, D) f32 acc
    denom = jnp.maximum(jnp.sum(mask, axis=1, keepdims=True), 1.0)    # (TB, 1)
    emb = summed / denom                                              # (TB, D)

    # ---- nn.Dropout(p), training mode (inverted dropout) ----------------------
    # Counter-based hash PRNG on (seed, global element index): every batch tile
    # draws an independent mask; fold 1/(1-p) scale into the keep mask.
    if DROPOUT_P > 0.0:
        row = lax.broadcasted_iota(jnp.int32, (TB, D), 0) + pl.program_id(0) * TB
        col = lax.broadcasted_iota(jnp.int32, (TB, D), 1)
        h = _fmix32((row * D + col) ^ seed_ref[0])
        h = h & jnp.int32(0x7FFFFFFF)                                 # 31 uniform bits
        thresh = jnp.int32(int(DROPOUT_P * float(1 << 31)))
        scale = jnp.float32(1.0 / (1.0 - DROPOUT_P))
        emb = emb * jnp.where(h >= thresh, scale, jnp.float32(0.0))

    # ---- classif_layer = nn.Linear(doc_embs_dim, nlabels) (lane-padded) -------
    logits = jnp.dot(emb, w_ref[...], preferred_element_type=jnp.float32)
    out_ref[...] = logits + b_ref[...]                                # (TB, npad)


def _pick_block_b(B, T, D, itemsize, budget_bytes=4 << 20):
    """Largest batch tile (multiple of 8, dividing B) whose docs slab fits the budget."""
    if B <= 8:
        return B
    cap = (budget_bytes // (T * D * itemsize)) // 8 * 8
    cap = max(8, min(B, cap))
    for tb in range(cap, 7, -8):
        if B % tb == 0:
            return tb
    return B   # fall back to a single (un-tiled) block


@jax.jit
def doc_classifier(seed, docs, doc_fragments, w, b):
    B, T, D = docs.shape
    nlabels = w.shape[1]

    # bf16 halves HBM traffic of the dominant docs read; kernel accumulates in f32.
    docs_bf16 = docs.astype(jnp.bfloat16)

    # Lane-dense classifier head: pad nlabels -> multiple of 128 with zero columns.
    npad = max(LANE, ((nlabels + LANE - 1) // LANE) * LANE)
    w_p = jnp.zeros((D, npad), jnp.float32).at[:, :nlabels].set(w.astype(jnp.float32))
    b_p = jnp.zeros((1, npad), jnp.float32).at[:, :nlabels].set(
        b.reshape(1, nlabels).astype(jnp.float32))

    tb = _pick_block_b(B, T, D, docs_bf16.dtype.itemsize)
    grid = (B // tb,)

    cost = pl.CostEstimate(
        flops=2 * B * T * D + 2 * B * D * npad,
        transcendentals=0,
        bytes_accessed=(B * T * D * docs_bf16.dtype.itemsize
                        + D * npad * 4 + (B + 1) * npad * 4 + B * 4),
    )

    out_padded = pl.pallas_call(
        doc_classifier_kernel,
        out_shape=jax.ShapeDtypeStruct((B, npad), jnp.float32),
        grid_spec=pltpu.PrefetchScalarGridSpec(
            num_scalar_prefetch=1,                       # dropout seed lands in SMEM
            grid=grid,
            in_specs=[
                pl.BlockSpec((tb, T, D), lambda i, seed: (i, 0, 0)),   # docs (tiled)
                pl.BlockSpec((tb, 1), lambda i, seed: (i, 0)),         # fragment counts
                pl.BlockSpec((D, npad), lambda i, seed: (0, 0)),       # classifier W
                pl.BlockSpec((1, npad), lambda i, seed: (0, 0)),       # classifier b
            ],
            out_specs=pl.BlockSpec((tb, npad), lambda i, seed: (i, 0)),
        ),
        compiler_params=pltpu.CompilerParams(
            dimension_semantics=("parallel",),           # independent batch tiles
            vmem_limit_bytes=32 * 1024 * 1024,
        ),
        cost_estimate=cost,
    )(seed, docs_bf16, doc_fragments, w_p, b_p)

    return out_padded[:, :nlabels]


if __name__ == "__main__":
    # Small deterministic shapes: batch=8 docs, up to 8 fragments each,
    # doc_embs_dim=128, nlabels=8.
    B, T, D, NLABELS = 8, 8, 128, 8

    key = jax.random.PRNGKey(0)
    k_docs, k_w, k_b, k_len = jax.random.split(key, 4)

    docs = jax.random.normal(k_docs, (B, T, D), dtype=jnp.float32)
    doc_fragments = jax.random.randint(k_len, (B, 1), 1, T + 1, dtype=jnp.int32)

    # nn.Linear(doc_embs_dim, nlabels) parameters (deterministic synthetic init).
    bound = 1.0 / jnp.sqrt(jnp.float32(D))
    w = jax.random.uniform(k_w, (D, NLABELS), jnp.float32, -bound, bound)
    b = jax.random.uniform(k_b, (1, NLABELS), jnp.float32, -bound, bound)

    seed = jnp.array([1234], dtype=jnp.int32)

    logits = doc_classifier(seed, docs, doc_fragments, w, b)
    jax.block_until_ready(logits)
    assert logits.shape == (B, NLABELS) and logits.dtype == jnp.float32
    assert bool(jnp.all(jnp.isfinite(logits)))
    print("KERNEL_OK")
</pallas_src>

<mosaic_0001>
module attributes {stable_mosaic.version = 11 : i64} {
  func.func @doc_classifier_kernel(%arg0: i32, %arg1: memref<1xi32, #tpu.memory_space<smem>>, %arg2: memref<8x8x128xbf16, #tpu.memory_space<vmem>>, %arg3: memref<8x1xi32, #tpu.memory_space<vmem>>, %arg4: memref<128x128xf32, #tpu.memory_space<vmem>>, %arg5: memref<1x128xf32, #tpu.memory_space<vmem>>, %arg6: memref<8x128xf32, #tpu.memory_space<vmem>>) attributes {dimension_semantics = [#tpu.dimension_semantics<parallel>], iteration_bounds = array<i64: 1>, scalar_prefetch = 1 : i64, scratch_operands = 0 : i64, tpu.core_type = #tpu.core_type<tc>, window_params = [{transform_indices = @transform_0, window_bounds = array<i64: 8, 8, 128>}, {transform_indices = @transform_1, window_bounds = array<i64: 8, 1>}, {pipeline_mode = #tpu.pipeline_mode<synchronous>, transform_indices = @transform_2, window_bounds = array<i64: 128, 128>}, {pipeline_mode = #tpu.pipeline_mode<synchronous>, transform_indices = @transform_3, window_bounds = array<i64: 1, 128>}, {transform_indices = @transform_4, window_bounds = array<i64: 8, 128>}]} {
    %0 = tpu.iota {dimensions = array<i32: 1>} : vector<8x8xi32>
    %c0 = arith.constant 0 : index
    %c0_0 = arith.constant 0 : index
    %1 = vector.load %arg3[%c0, %c0_0] : memref<8x1xi32, #tpu.memory_space<vmem>>, vector<8x1xi32>
    %2 = vector.broadcast %1 : vector<8x1xi32> to vector<8x8xi32>
    %3 = arith.cmpi slt, %0, %2 : vector<8x8xi32>
    %4 = arith.extui %3 : vector<8x8xi1> to vector<8x8xi32>
    %5 = arith.sitofp %4 : vector<8x8xi32> to vector<8x8xf32>
    %c0_1 = arith.constant 0 : index
    %c0_2 = arith.constant 0 : index
    %c0_3 = arith.constant 0 : index
    %6 = vector.load %arg2[%c0_1, %c0_2, %c0_3] : memref<8x8x128xbf16, #tpu.memory_space<vmem>>, vector<8x8x128xbf16>
    %7 = arith.extf %6 : vector<8x8x128xbf16> to vector<8x8x128xf32>
    %8 = vector.shape_cast %5 : vector<8x8xf32> to vector<8x8x1xf32>
    %9 = vector.broadcast %8 : vector<8x8x1xf32> to vector<8x8x128xf32>
    %10 = arith.mulf %7, %9 : vector<8x8x128xf32>
    %cst = arith.constant dense<0.000000e+00> : vector<8x128xf32>
    %11 = vector.multi_reduction <add>, %10, %cst [1] : vector<8x8x128xf32> to vector<8x128xf32>
    %cst_4 = arith.constant dense<0.000000e+00> : vector<8xf32>
    %12 = vector.multi_reduction <add>, %5, %cst_4 [1] : vector<8x8xf32> to vector<8xf32>
    %13 = vector.shape_cast %12 : vector<8xf32> to vector<8x1xf32>
    %cst_5 = arith.constant 1.000000e+00 : f32
    %14 = vector.broadcast %cst_5 : f32 to vector<8x1xf32>
    %15 = arith.maximumf %13, %14 : vector<8x1xf32>
    %16 = vector.broadcast %15 : vector<8x1xf32> to vector<8x128xf32>
    %17 = arith.divf %11, %16 : vector<8x128xf32>
    %18 = tpu.iota {dimensions = array<i32: 0>} : vector<8x128xi32>
    %c8_i32 = arith.constant 8 : i32
    %19 = arith.muli %arg0, %c8_i32 : i32
    %20 = vector.broadcast %19 : i32 to vector<8x128xi32>
    %21 = arith.addi %18, %20 : vector<8x128xi32>
    %22 = tpu.iota {dimensions = array<i32: 1>} : vector<8x128xi32>
    %c128_i32 = arith.constant 128 : i32
    %23 = vector.broadcast %c128_i32 : i32 to vector<8x128xi32>
    %24 = arith.muli %21, %23 : vector<8x128xi32>
    %25 = arith.addi %24, %22 : vector<8x128xi32>
    %c0_6 = arith.constant 0 : index
    %26 = memref.load %arg1[%c0_6] : memref<1xi32, #tpu.memory_space<smem>>
    %27 = vector.broadcast %26 : i32 to vector<8x128xi32>
    %28 = arith.xori %25, %27 : vector<8x128xi32>
    %c16_i32 = arith.constant 16 : i32
    %29 = vector.broadcast %c16_i32 : i32 to vector<8x128xi32>
    %30 = arith.shrui %28, %29 : vector<8x128xi32>
    %31 = arith.xori %28, %30 : vector<8x128xi32>
    %c-2048144789_i32 = arith.constant -2048144789 : i32
    %32 = vector.broadcast %c-2048144789_i32 : i32 to vector<8x128xi32>
    %33 = arith.muli %31, %32 : vector<8x128xi32>
    %c13_i32 = arith.constant 13 : i32
    %34 = vector.broadcast %c13_i32 : i32 to vector<8x128xi32>
    %35 = arith.shrui %33, %34 : vector<8x128xi32>
    %36 = arith.xori %33, %35 : vector<8x128xi32>
    %c-1028477387_i32 = arith.constant -1028477387 : i32
    %37 = vector.broadcast %c-1028477387_i32 : i32 to vector<8x128xi32>
    %38 = arith.muli %36, %37 : vector<8x128xi32>
    %c16_i32_7 = arith.constant 16 : i32
    %39 = vector.broadcast %c16_i32_7 : i32 to vector<8x128xi32>
    %40 = arith.shrui %38, %39 : vector<8x128xi32>
    %41 = arith.xori %38, %40 : vector<8x128xi32>
    %c2147483647_i32 = arith.constant 2147483647 : i32
    %42 = vector.broadcast %c2147483647_i32 : i32 to vector<8x128xi32>
    %43 = arith.andi %41, %42 : vector<8x128xi32>
    %c1073741824_i32 = arith.constant 1073741824 : i32
    %44 = vector.broadcast %c1073741824_i32 : i32 to vector<8x128xi32>
    %45 = arith.cmpi sge, %43, %44 : vector<8x128xi32>
    %cst_8 = arith.constant 2.000000e+00 : f32
    %cst_9 = arith.constant 0.000000e+00 : f32
    %46 = vector.broadcast %cst_8 : f32 to vector<8x128xf32>
    %47 = vector.broadcast %cst_9 : f32 to vector<8x128xf32>
    %48 = arith.select %45, %46, %47 : vector<8x128xi1>, vector<8x128xf32>
    %49 = arith.mulf %17, %48 : vector<8x128xf32>
    %c0_10 = arith.constant 0 : index
    %c0_11 = arith.constant 0 : index
    %50 = vector.load %arg4[%c0_10, %c0_11] : memref<128x128xf32, #tpu.memory_space<vmem>>, vector<128x128xf32>
    %cst_12 = arith.constant dense<0.000000e+00> : vector<8x128xf32>
    %51 = tpu.matmul %49, %50, %cst_12 {dimension_numbers = #tpu.dot_dimension_numbers<[1], [0], [0], [1], [0, 0, 1, 1], [], []>} : vector<8x128xf32>, vector<128x128xf32>, vector<8x128xf32> -> vector<8x128xf32>
    %c0_13 = arith.constant 0 : index
    %c0_14 = arith.constant 0 : index
    %52 = vector.load %arg5[%c0_13, %c0_14] : memref<1x128xf32, #tpu.memory_space<vmem>>, vector<1x128xf32>
    %53 = vector.broadcast %52 : vector<1x128xf32> to vector<8x128xf32>
    %54 = arith.addf %51, %53 : vector<8x128xf32>
    %c0_15 = arith.constant 0 : index
    %c0_16 = arith.constant 0 : index
    %55 = vector.load %arg6[%c0_15, %c0_16] : memref<8x128xf32, #tpu.memory_space<vmem>>, vector<8x128xf32>
    tpu.vector_store %arg6[%c0_15, %c0_16], %54 {strides = array<i32>} : memref<8x128xf32, #tpu.memory_space<vmem>>, vector<8x128xf32>,
    return
  }
  func.func @transform_0(%arg0: i32, %arg1: memref<1xi32, #tpu.memory_space<smem>>) -> (i32, i32, i32) {
    %c0_i32 = arith.constant 0 : i32
    %c0_i32_0 = arith.constant 0 : i32
    %c0_i32_1 = arith.constant 0 : i32
    return %arg0, %c0_i32, %c0_i32_0 : i32, i32, i32
  }
  func.func @transform_1(%arg0: i32, %arg1: memref<1xi32, #tpu.memory_space<smem>>) -> (i32, i32) {
    %c0_i32 = arith.constant 0 : i32
    %c0_i32_0 = arith.constant 0 : i32
    return %arg0, %c0_i32 : i32, i32
  }
  func.func @transform_2(%arg0: i32, %arg1: memref<1xi32, #tpu.memory_space<smem>>) -> (i32, i32) {
    %c0_i32 = arith.constant 0 : i32
    %c0_i32_0 = arith.constant 0 : i32
    %c0_i32_1 = arith.constant 0 : i32
    return %c0_i32, %c0_i32_0 : i32, i32
  }
  func.func @transform_3(%arg0: i32, %arg1: memref<1xi32, #tpu.memory_space<smem>>) -> (i32, i32) {
    %c0_i32 = arith.constant 0 : i32
    %c0_i32_0 = arith.constant 0 : i32
    %c0_i32_1 = arith.constant 0 : i32
    return %c0_i32, %c0_i32_0 : i32, i32
  }
  func.func @transform_4(%arg0: i32, %arg1: memref<1xi32, #tpu.memory_space<smem>>) -> (i32, i32) {
    %c0_i32 = arith.constant 0 : i32
    %c0_i32_0 = arith.constant 0 : i32
    return %arg0, %c0_i32 : i32, i32
  }
}

</mosaic_0001>

<llo_original>
// kernel: doc_classifier.1
$region0: #{doc_classifier.1}
  #allocation0 [shape = 'u32[]', space=smem, size = 0x4, offset = 0x4, fixed_abs, tag = 'smem constant byte address 0x4 - core index']
  #allocation1 [shape = 'u32[144,128]{1,0:T(1,128)}', space=vmem, size = 0x12000, scoped, tag = 'internal scratch']
  #allocation2 [shape = 's32[1]{0}', space=sflag, size = 0x4, scoped, tag = 'scoped memory for doc_classifier.1']
  #allocation3 [shape = 's32[1]{0:T(128)S(6)}', space=smem, size = 0x200, scoped, tag = 'prefetched SMEM operand 0']
  %s0 = inlined_call_operand.<no memory space> [shape: s32[1], index: 0, kind: input, shape index: {}]
  %s1 = inlined_call_operand.vmem [shape: bf16[8,8,128], index: 1, kind: input, shape index: {}]
  %s2 = inlined_call_operand.vmem [shape: s32[8,1], index: 2, kind: input, shape index: {}]
  %s3 = inlined_call_operand.vmem [shape: f32[128,128], index: 3, kind: input, shape index: {}]
  %s4 = inlined_call_operand.vmem [shape: f32[1,128], index: 4, kind: input, shape index: {}]
  %s5 = inlined_call_operand.hbm [shape: f32[8,128], index: 5, kind: output, shape index: {}]
  %s6 = sld [smem:[#allocation0]]
  $region26: #{doc_classifier.1} parent=0
    _
  %s8 = ssub.s32 1, %s6
  %s9 = scalar_select 0, %s8, %s6
  %10 = sst [smem:[#allocation3]] %s0
  $region1: #{doc_classifier.1} parent=0
    #allocation4 [shape = 'u8[4096]{0}', space=vmem, size = 0x1000, scoped, tag = 'output window, operand 0, single buffered']
    #allocation5 [shape = 's32[1]{0}', space=sflag, size = 0x4, scoped, tag = 'scoped memory for doc_classifier.1']
    %11 = vsyncpa [#allocation5], 0
    // Predicated region
    $region2: #{doc_classifier.1} parent=1 // pred_check
      _
    $region3: #{doc_classifier.1} parent=1 // pred_check_branch
      %13 = sbr.rel (0) target = $region5
    $region4: #{doc_classifier.1} parent=1 // pred_region
      _
    $region5: #{doc_classifier.1} parent=1 // pred_fallthru
      _
    // Predicated region
    $region6: #{doc_classifier.1} parent=1 // pred_check
      _
    $region7: #{doc_classifier.1} parent=1 // pred_check_branch
      %15 = sbr.rel (0) target = $region9
    $region8: #{doc_classifier.1} parent=1 // pred_region
      _
    $region9: #{doc_classifier.1} parent=1 // pred_fallthru
      _
    // Predicated region
    $region10: #{doc_classifier.1} parent=1 // pred_check
      _
    $region11: #{doc_classifier.1} parent=1 // pred_check_branch
      %17 = sbr.rel (0) target = $region13
    $region12: #{doc_classifier.1} parent=1 // pred_region
      _
    $region13: #{doc_classifier.1} parent=1 // pred_fallthru
      _
    // Predicated region
    $region14: #{doc_classifier.1} parent=1 // pred_check
      _
    $region15: #{doc_classifier.1} parent=1 // pred_check_branch
      %19 = sbr.rel (0) target = $region17
    $region16: #{doc_classifier.1} parent=1 // pred_region
      _
    $region17: #{doc_classifier.1} parent=1 // pred_fallthru
      _
    %v20 = vlaneseq
    %v21 = vand.u32 %v20, 127
    %v22 = vld [vmem:[%s2] sm:$0xff]
    %23 = vset.pattern.permute.xlu0 0
    %24 = vperm.xlu0 %23, %v22
    %v25 = vpop.permute.xlu0 %24
    %vm26 = vcmp.lt.s32.totalorder %v21, %v25
    %v27 = vsel %vm26, 1, 0
    %v28 = vcvt.s32.f32 %v27
    %v29 = vld [vmem:[%s1] sm:$0xf]
    %v30 = vld [vmem:[%s1 + $0x4] sm:$0xf]
    %v31 = vld [vmem:[%s1 + $0x8] sm:$0xf]
    %v32 = vld [vmem:[%s1 + $0xc] sm:$0xf]
    %v33 = vld [vmem:[%s1 + $0x10] sm:$0xf]
    %v34 = vld [vmem:[%s1 + $0x14] sm:$0xf]
    %v35 = vld [vmem:[%s1 + $0x18] sm:$0xf]
    %v36 = vld [vmem:[%s1 + $0x1c] sm:$0xf]
    %v37 = vunpack.c.l.bf16 %v29
    %v38 = vunpack.c.l.bf16 %v30
    %v39 = vunpack.c.l.bf16 %v31
    %v40 = vunpack.c.l.bf16 %v32
    %v41 = vunpack.c.l.bf16 %v33
    %v42 = vunpack.c.l.bf16 %v34
    %v43 = vunpack.c.l.bf16 %v35
    %v44 = vunpack.c.l.bf16 %v36
    %v45 = vlaneseq
    %v46 = vshrl.u32 %v45, 7
    %v47 = vsub.s32 0, %v46
    %v48 = vrot.slane %v28, %v47
    %50 = vbcast.lane.b32.xlu0 %v48, 256
    %v51 = vpop.permute.xlu0 %50
    %v52 = vlaneseq
    %v53 = vshrl.u32 %v52, 7
    %v54 = vsub.s32 1, %v53
    %v55 = vrot.slane %v28, %v54
    %57 = vbcast.lane.b32.xlu0 %v55, 256
    %v58 = vpop.permute.xlu0 %57
    %v59 = vlaneseq
    %v60 = vshrl.u32 %v59, 7
    %v61 = vsub.s32 2, %v60
    %v62 = vrot.slane %v28, %v61
    %64 = vbcast.lane.b32.xlu0 %v62, 256
    %v65 = vpop.permute.xlu0 %64
    %v66 = vlaneseq
    %v67 = vshrl.u32 %v66, 7
    %v68 = vsub.s32 3, %v67
    %v69 = vrot.slane %v28, %v68
    %71 = vbcast.lane.b32.xlu0 %v69, 256
    %v72 = vpop.permute.xlu0 %71
    %v73 = vlaneseq
    %v74 = vshrl.u32 %v73, 7
    %v75 = vsub.s32 4, %v74
    %v76 = vrot.slane %v28, %v75
    %78 = vbcast.lane.b32.xlu0 %v76, 256
    %v79 = vpop.permute.xlu0 %78
    %v80 = vlaneseq
    %v81 = vshrl.u32 %v80, 7
    %v82 = vsub.s32 5, %v81
    %v83 = vrot.slane %v28, %v82
    %85 = vbcast.lane.b32.xlu0 %v83, 256
    %v86 = vpop.permute.xlu0 %85
    %v87 = vlaneseq
    %v88 = vshrl.u32 %v87, 7
    %v89 = vsub.s32 6, %v88
    %v90 = vrot.slane %v28, %v89
    %92 = vbcast.lane.b32.xlu0 %v90, 256
    %v93 = vpop.permute.xlu0 %92
    %v94 = vlaneseq
    %v95 = vshrl.u32 %v94, 7
    %v96 = vsub.s32 7, %v95
    %v97 = vrot.slane %v28, %v96
    %99 = vbcast.lane.b32.xlu0 %v97, 256
    %v100 = vpop.permute.xlu0 %99
    %v101 = vmul.f32 %v37, %v51
    %v102 = vmul.f32 %v38, %v58
    %v103 = vmul.f32 %v39, %v65
    %v104 = vmul.f32 %v40, %v72
    %v105 = vmul.f32 %v41, %v79
    %v106 = vmul.f32 %v42, %v86
    %v107 = vmul.f32 %v43, %v93
    %v108 = vmul.f32 %v44, %v100
    %v109 = vrot.slane %v101, 4
    %v110 = vadd.f32 %v101, %v109
    %v111 = vrot.slane %v110, 2
    %v112 = vadd.f32 %v110, %v111
    %v113 = vrot.slane %v112, 1
    %v114 = vadd.f32 %v112, %v113
    %v115 = vrot.slane %v102, 4
    %v116 = vadd.f32 %v102, %v115
    %v117 = vrot.slane %v116, 2
    %v118 = vadd.f32 %v116, %v117
    %v119 = vrot.slane %v118, 1
    %v120 = vadd.f32 %v118, %v119
    %v121 = vrot.slane %v103, 4
    %v122 = vadd.f32 %v103, %v121
    %v123 = vrot.slane %v122, 2
    %v124 = vadd.f32 %v122, %v123
    %v125 = vrot.slane %v124, 1
    %v126 = vadd.f32 %v124, %v125
    %v127 = vrot.slane %v104, 4
    %v128 = vadd.f32 %v104, %v127
    %v129 = vrot.slane %v128, 2
    %v130 = vadd.f32 %v128, %v129
    %v131 = vrot.slane %v130, 1
    %v132 = vadd.f32 %v130, %v131
    %v133 = vrot.slane %v105, 4
    %v134 = vadd.f32 %v105, %v133
    %v135 = vrot.slane %v134, 2
    %v136 = vadd.f32 %v134, %v135
    %v137 = vrot.slane %v136, 1
    %v138 = vadd.f32 %v136, %v137
    %v139 = vrot.slane %v106, 4
    %v140 = vadd.f32 %v106, %v139
    %v141 = vrot.slane %v140, 2
    %v142 = vadd.f32 %v140, %v141
    %v143 = vrot.slane %v142, 1
    %v144 = vadd.f32 %v142, %v143
    %v145 = vrot.slane %v107, 4
    %v146 = vadd.f32 %v107, %v145
    %v147 = vrot.slane %v146, 2
    %v148 = vadd.f32 %v146, %v147
    %v149 = vrot.slane %v148, 1
    %v150 = vadd.f32 %v148, %v149
    %v151 = vrot.slane %v108, 4
    %v152 = vadd.f32 %v108, %v151
    %v153 = vrot.slane %v152, 2
    %v154 = vadd.f32 %v152, %v153
    %v155 = vrot.slane %v154, 1
    %v156 = vadd.f32 %v154, %v155
    %vm157 = vcmask 64512
    %v158 = vsel %vm157, %v28, 0.0
    %159 = vadd.xlane.f32.xlu0 %v158
    %v160 = vpop.xlane.xlu0 %159
    %v161 = vmax.f32 %v160, 1.0
    %v163 = vrot.slane %v161, 1
    %v164 = vrot.slane %v161, 2
    %v165 = vrot.slane %v161, 3
    %v166 = vrot.slane %v161, 4
    %v167 = vrot.slane %v161, 5
    %v168 = vrot.slane %v161, 6
    %v169 = vrot.slane %v161, 7
    %v178 = vrcp.pop %v161
    %v179 = vmul.f32 %v114, %v178
    %v180 = vrcp.pop %v163
    %v181 = vmul.f32 %v120, %v180
    %v182 = vrcp.pop %v164
    %v183 = vmul.f32 %v126, %v182
    %v184 = vrcp.pop %v165
    %v185 = vmul.f32 %v132, %v184
    %v186 = vrcp.pop %v166
    %v187 = vmul.f32 %v138, %v186
    %v188 = vrcp.pop %v167
    %v189 = vmul.f32 %v144, %v188
    %v190 = vrcp.pop %v168
    %v191 = vmul.f32 %v150, %v190
    %v192 = vrcp.pop %v169
    %v193 = vmul.f32 %v156, %v192
    %v194 = vlaneseq
    %v195 = vshrl.u32 %v194, 7
    %s196 = smul.u32 0, 8
    %v197 = vstv %s196
    %v198 = vadd.s32 %v195, %v197
    %v199 = vmul.u32 %v198, 128
    %v200 = vadd.s32 %v199, %v21
    %s201 = sld [smem:[#allocation3]]
    %v202 = vstv %s201
    %v203 = vxor.u32 %v200, %v202
    %v204 = vshrl.u32 %v203, 16
    %v205 = vxor.u32 %v203, %v204
    %v206 = vmul.u32 %v205, 2246822507
    %v207 = vshrl.u32 %v206, 13
    %v208 = vxor.u32 %v206, %v207
    %v209 = vmul.u32 %v208, 3266489909
    %v210 = vshrl.u32 %v209, 16
    %v211 = vxor.u32 %v209, %v210
    %v212 = vand.u32 %v211, 2147483647
    %vm213 = vcmp.ge.s32.totalorder %v212, 1073741824
    %v214 = vsel %vm213, 2.0, 0.0
    %v216 = vrot.slane %v214, 1
    %v217 = vrot.slane %v214, 2
    %v218 = vrot.slane %v214, 3
    %v219 = vrot.slane %v214, 4
    %v220 = vrot.slane %v214, 5
    %v221 = vrot.slane %v214, 6
    %v222 = vrot.slane %v214, 7
    %v231 = vmul.f32 %v179, %v214
    %v232 = vmul.f32 %v181, %v216
    %v233 = vmul.f32 %v183, %v217
    %v234 = vmul.f32 %v185, %v218
    %v235 = vmul.f32 %v187, %v219
    %v236 = vmul.f32 %v189, %v220
    %v237 = vmul.f32 %v191, %v221
    %v238 = vmul.f32 %v193, %v222
    %v239 = vld [vmem:[%s3] sm:$0xff]
    %v240 = vld [vmem:[%s3 + $0x8] sm:$0xff]
    %v241 = vld [vmem:[%s3 + $0x10] sm:$0xff]
    %v242 = vld [vmem:[%s3 + $0x18] sm:$0xff]
    %v243 = vld [vmem:[%s3 + $0x20] sm:$0xff]
    %v244 = vld [vmem:[%s3 + $0x28] sm:$0xff]
    %v245 = vld [vmem:[%s3 + $0x30] sm:$0xff]
    %v246 = vld [vmem:[%s3 + $0x38] sm:$0xff]
    %v247 = vld [vmem:[%s3 + $0x40] sm:$0xff]
    %v248 = vld [vmem:[%s3 + $0x48] sm:$0xff]
    %v249 = vld [vmem:[%s3 + $0x50] sm:$0xff]
    %v250 = vld [vmem:[%s3 + $0x58] sm:$0xff]
    %v251 = vld [vmem:[%s3 + $0x60] sm:$0xff]
    %v252 = vld [vmem:[%s3 + $0x68] sm:$0xff]
    %v253 = vld [vmem:[%s3 + $0x70] sm:$0xff]
    %v254 = vld [vmem:[%s3 + $0x78] sm:$0xff]
    %v255 = vld [vmem:[%s4] sm:$0x1]
    %v257 = vlaneseq
    %v258 = vshrl.u32 %v257, 7
    %v259 = vsub.s32 0, %v258
    %v260 = vrot.slane %v255, %v259
    %v270 = vrot.slane %v232, 7
    %vm271 = vcmask 1041409
    %v272 = vsel %vm271, %v270, %v231
    %v273 = vrot.slane %v233, 6
    %vm274 = vcmask 1042434
    %v275 = vsel %vm274, %v273, %v272
    %v276 = vrot.slane %v234, 5
    %vm277 = vcmask 1043459
    %v278 = vsel %vm277, %v276, %v275
    %v279 = vrot.slane %v235, 4
    %vm280 = vcmask 1044484
    %v281 = vsel %vm280, %v279, %v278
    %v282 = vrot.slane %v236, 3
    %vm283 = vcmask 1045509
    %v284 = vsel %vm283, %v282, %v281
    %v285 = vrot.slane %v237, 2
    %vm286 = vcmask 1046534
    %v287 = vsel %vm286, %v285, %v284
    %v288 = vrot.slane %v238, 1
    %vm289 = vcmask 1047559
    %v290 = vsel %vm289, %v288, %v287
    %292 = vmatprep.subr.mxu0 0.0
    %293 = vmatpush1.msra.mxu0 %v239
    %294 = vmatprep.subr.mxu0 0.0
    %295 = vmatpush1.msra.mxu0 %v240
    %296 = vmatprep.subr.mxu0 0.0
    %297 = vmatpush1.msra.mxu0 %v241
    %298 = vmatprep.subr.mxu0 0.0
    %299 = vmatpush1.msra.mxu0 %v242
    %300 = vmatprep.subr.mxu0 0.0
    %301 = vmatpush1.msra.mxu0 %v243
    %302 = vmatprep.subr.mxu0 0.0
    %303 = vmatpush1.msra.mxu0 %v244
    %304 = vmatprep.subr.mxu0 0.0
    %305 = vmatpush1.msra.mxu0 %v245
    %306 = vmatprep.subr.mxu0 0.0
    %307 = vmatpush1.msra.mxu0 %v246
    %308 = vmatprep.subr.mxu0 0.0
    %309 = vmatpush1.msra.mxu0 %v247
    %310 = vmatprep.subr.mxu0 0.0
    %311 = vmatpush1.msra.mxu0 %v248
    %312 = vmatprep.subr.mxu0 0.0
    %313 = vmatpush1.msra.mxu0 %v249
    %314 = vmatprep.subr.mxu0 0.0
    %315 = vmatpush1.msra.mxu0 %v250
    %316 = vmatprep.subr.mxu0 0.0
    %317 = vmatpush1.msra.mxu0 %v251
    %318 = vmatprep.subr.mxu0 0.0
    %319 = vmatpush1.msra.mxu0 %v252
    %320 = vmatprep.subr.mxu0 0.0
    %321 = vmatpush1.msra.mxu0 %v253
    %322 = vmatprep.subr.mxu0 0.0
    %323 = vmatpush1.msra.mxu0 %v254
    %324 = vmatprep.subr.mxu0 0.0
    %325 = vmatpush1.msra.mxu0 0.0
    %326 = vmatprep.subr.mxu0 0.0
    %327 = vmatpush1.msra.mxu0 0.0
    %328 = vmatprep.subr.mxu0 0.0
    %329 = vmatpush1.msra.mxu0 0.0
    %330 = vmatprep.subr.mxu0 0.0
    %331 = vmatpush1.msra.mxu0 0.0
    %332 = vmatprep.subr.mxu0 0.0
    %333 = vmatpush1.msra.mxu0 0.0
    %334 = vmatprep.subr.mxu0 0.0
    %335 = vmatpush1.msra.mxu0 0.0
    %336 = vmatprep.subr.mxu0 0.0
    %337 = vmatpush1.msra.mxu0 0.0
    %338 = vmatprep.subr.mxu0 0.0
    %339 = vmatpush1.msra.mxu0 0.0
    %340 = vmatprep.subr.mxu0 0.0
    %341 = vmatpush1.msra.mxu0 0.0
    %342 = vmatprep.subr.mxu0 0.0
    %343 = vmatpush1.msra.mxu0 0.0
    %344 = vmatprep.subr.mxu0 0.0
    %345 = vmatpush1.msra.mxu0 0.0
    %346 = vmatprep.subr.mxu0 0.0
    %347 = vmatpush1.msra.mxu0 0.0
    %348 = vmatprep.subr.mxu0 0.0
    %349 = vmatpush1.msra.mxu0 0.0
    %350 = vmatprep.subr.mxu0 0.0
    %351 = vmatpush1.msra.mxu0 0.0
    %352 = vmatprep.subr.mxu0 0.0
    %353 = vmatpush1.msra.mxu0 0.0
    %354 = vmatprep.subr.mxu0 0.0
    %355 = vmatpush1.msra.mxu0 0.0
    %356 = vmatprep.mubr.f32.mxu0 0.0
    %357 = vmatmul.mubr.f32.gmra.mrb[0].mxu0 %v290
    %v358 = vpop.f32.mrb[0].mxu0
    %v359 = vadd.f32 %v260, %v358
    %v360 = vpop.f32.mrb[0].mxu0
    %361 = vdwg.mxu0
    %362 = vst [vmem:[#allocation4] sm:$0xff] %v359
    // Predicated region
    $region18: #{doc_classifier.1} parent=1 // pred_check
      _
    $region19: #{doc_classifier.1} parent=1 // pred_check_branch
      %364 = sbr.rel (0) target = $region21
    $region20: #{doc_classifier.1} parent=1 // pred_region
      %s366 = ssub.s32 128, 128
      %367 = vsyncadd [#allocation5], %s366
      %s369 = sshll.u32 [#allocation4], 4
      %s370 = int_to_ptr.vmem [resolvable:$true] %s369
      %372 = dma.vmem_to_hbm [thread:$0]  %s370, 128, %s5, [#allocation5]
    $region21: #{doc_classifier.1} parent=1 // pred_fallthru
      _
    // Predicated region
    $region22: #{doc_classifier.1} parent=1 // pred_check
      _
    $region23: #{doc_classifier.1} parent=1 // pred_check_branch
      %374 = sbr.rel (0) target = $region25
    $region24: #{doc_classifier.1} parent=1 // pred_region
      %375 = dma.done [#allocation5], 128
    $region25: #{doc_classifier.1} parent=1 // pred_fallthru
      _
    %376 = vsyncpa [#allocation5], 1

</llo_original>
